<compile_context>
chip_gen: v6e
topology: v6e:2x2x1
jax: 0.10.0
libtpu: 0.0.40
codegen_flags: <defaults>
</compile_context>

<pallas_src>
import functools

import jax
import jax.numpy as jnp
from jax.experimental import pallas as pl
from jax.experimental.pallas import tpu as pltpu


def _make_deconv_in_kernel(eps):
    """y = W2 @ patches (MXU, bf16 x bf16 -> f32 accumulate), fused instance norm (affine)."""

    def kernel(p_ref, w_ref, g_ref, b_ref, o_ref):
        # p_ref: (K*K*Cin, Ho*Wo) bf16 | w_ref: (Cout, K*K*Cin) bf16
        # g_ref, b_ref: (Cout, 1) f32  | o_ref: (Cout, Ho*Wo) f32
        y = jnp.dot(w_ref[...], p_ref[...], preferred_element_type=jnp.float32)
        inv_n = 1.0 / y.shape[1]
        mean = jnp.sum(y, axis=1, keepdims=True) * inv_n            # XLU cross-lane reduce
        yc = y - mean
        var = jnp.sum(yc * yc, axis=1, keepdims=True) * inv_n       # biased variance (as torch)
        scale = jax.lax.rsqrt(var + eps) * g_ref[...]               # (Cout, 1), EUP rsqrt
        o_ref[...] = (yc * scale + b_ref[...]).astype(o_ref.dtype)

    return kernel


def deconv_layer_pallas(x_nchw, w_t, bias, gamma, beta, *, stride, output_padding, eps=1e-5):
    """DeconvLayer.forward (norm='instance') on NCHW input.

    `bias` is accepted for API parity but unused: a per-channel constant added before
    InstanceNorm is exactly cancelled by the mean subtraction (variance unchanged).
    """
    del bias
    N, Cin, H, W = x_nchw.shape
    _, Cout, K, _ = w_t.shape
    pad = K // 2                      # mirrors the module's padding_size = kernel_size // 2
    Ho = (H - 1) * stride - 2 * pad + K + output_padding
    Wo = (W - 1) * stride - 2 * pad + K + output_padding
    pad_lo = K - 1 - pad
    pad_hi = K - 1 - pad + output_padding
    KKC = K * K * Cin
    HW = Ho * Wo

    # ---- glue (stays channel-first; fuses into a couple of tiny XLA ops under jit) ----------
    # zero-stuff (interior padding = stride-1) + edge pad in ONE lax.pad
    x_pad = jax.lax.pad(
        x_nchw, jnp.zeros((), x_nchw.dtype),
        ((0, 0, 0), (0, 0, 0),
         (pad_lo, pad_hi, stride - 1), (pad_lo, pad_hi, stride - 1)))
    # im2col, tap-major / channel-minor: patches[n, (kh*K+kw)*Cin + c, oh*Wo + ow]
    cols = [x_pad[:, :, kh:kh + Ho, kw:kw + Wo].reshape(N, Cin, HW)
            for kh in range(K) for kw in range(K)]
    patches = jnp.concatenate(cols, axis=1).astype(jnp.bfloat16)       # (N, K*K*Cin, Ho*Wo)

    # ConvTranspose2d weight (Cin, Cout, K, K): spatial flip -> stride-1 correlation weight,
    # laid out to match `patches`: W2[oc, (kh*K+kw)*Cin + ic]
    w_flip = jnp.flip(w_t, axis=(2, 3))
    w2 = jnp.transpose(w_flip, (1, 2, 3, 0)).reshape(Cout, KKC).astype(jnp.bfloat16)

    g2 = gamma.reshape(Cout, 1).astype(jnp.float32)
    b2 = beta.reshape(Cout, 1).astype(jnp.float32)

    out_flat = pl.pallas_call(
        _make_deconv_in_kernel(eps),
        out_shape=jax.ShapeDtypeStruct((N, Cout, HW), jnp.float32),
        grid_spec=pltpu.PrefetchScalarGridSpec(
            num_scalar_prefetch=0,
            grid=(N,),
            in_specs=[
                pl.BlockSpec((None, KKC, HW), lambda n: (n, 0, 0)),    # per-sample patches
                pl.BlockSpec((Cout, KKC), lambda n: (0, 0)),           # grid-invariant weight
                pl.BlockSpec((Cout, 1), lambda n: (0, 0)),             # gamma
                pl.BlockSpec((Cout, 1), lambda n: (0, 0)),             # beta
            ],
            out_specs=pl.BlockSpec((None, Cout, HW), lambda n: (n, 0, 0)),
        ),
        compiler_params=pltpu.CompilerParams(dimension_semantics=("parallel",)),
    )(patches, w2, g2, b2)

    # (N, Cout, Ho*Wo) is flattened NCHW already -> free reshape, no transpose.
    return out_flat.reshape(N, Cout, Ho, Wo)


def deconv_layer_reference(x, w_t, bias, gamma, beta, *, stride, output_padding, eps=1e-5):
    """Pure-JAX/XLA reference of the same forward pass (NCHW, full f32)."""
    K = w_t.shape[2]
    pad = K // 2
    w_conv = jnp.transpose(jnp.flip(w_t, (2, 3)), (1, 0, 2, 3))   # (Cout, Cin, K, K)
    y = jax.lax.conv_general_dilated(
        x, w_conv, window_strides=(1, 1),
        padding=[(K - 1 - pad, K - 1 - pad + output_padding)] * 2,
        lhs_dilation=(stride, stride),
        dimension_numbers=('NCHW', 'OIHW', 'NCHW'),
        precision=jax.lax.Precision.HIGHEST)
    y = y + bias[None, :, None, None]
    mean = jnp.mean(y, axis=(2, 3), keepdims=True)
    var = jnp.mean((y - mean) ** 2, axis=(2, 3), keepdims=True)
    yn = (y - mean) * jax.lax.rsqrt(var + eps)
    return yn * gamma[None, :, None, None] + beta[None, :, None, None]


if __name__ == "__main__":
    # DeconvLayer(in_channels=4, out_channels=8, kernel_size=3, stride=2,
    #             output_padding=1, norm='instance')
    N, Cin, Cout, H, W = 2, 4, 8, 16, 16
    K, stride, output_padding = 3, 2, 1

    key = jax.random.PRNGKey(0)
    kx, kw, kb, kg, kbe = jax.random.split(key, 5)
    x = jax.random.normal(kx, (N, Cin, H, W), jnp.float32)
    w_t = jax.random.normal(kw, (Cin, Cout, K, K), jnp.float32) * 0.2
    bias = jax.random.normal(kb, (Cout,), jnp.float32) * 0.1
    gamma = 1.0 + 0.1 * jax.random.normal(kg, (Cout,), jnp.float32)
    beta = 0.1 * jax.random.normal(kbe, (Cout,), jnp.float32)

    fwd = jax.jit(functools.partial(deconv_layer_pallas,
                                    stride=stride, output_padding=output_padding))
    out = jax.block_until_ready(fwd(x, w_t, bias, gamma, beta))
    assert out.shape == (N, Cout, 32, 32), out.shape

    # (1) Precision-matched check: reference run on the same bf16-rounded operands -> the only
    #     remaining differences are accumulation order / rsqrt, so the tolerance can be tight.
    xb = x.astype(jnp.bfloat16).astype(jnp.float32)
    wb = w_t.astype(jnp.bfloat16).astype(jnp.float32)
    ref_matched = deconv_layer_reference(xb, wb, bias, gamma, beta,
                                         stride=stride, output_padding=output_padding)
    err_matched = float(jnp.max(jnp.abs(out - ref_matched)))
    assert err_matched < 1e-3, f"mismatch vs bf16-matched reference: {err_matched}"

    # (2) Honest check vs the full-f32 (HIGHEST) reference: bf16 input rounding (~2^-9 rel) over
    #     a 36-deep contraction on these magnitudes bounds the post-norm error well under 4e-2.
    ref_f32 = deconv_layer_reference(x, w_t, bias, gamma, beta,
                                     stride=stride, output_padding=output_padding)
    err_f32 = float(jnp.max(jnp.abs(out - ref_f32)))
    assert err_f32 < 4e-2, f"mismatch vs f32 reference: {err_f32}"

    print("KERNEL_OK")
</pallas_src>

<mosaic_0001>
module attributes {stable_mosaic.version = 11 : i64} {
  func.func @kernel(%arg0: i32, %arg1: memref<1x36x1024xbf16, #tpu.memory_space<vmem>>, %arg2: memref<8x36xbf16, #tpu.memory_space<vmem>>, %arg3: memref<8x1xf32, #tpu.memory_space<vmem>>, %arg4: memref<8x1xf32, #tpu.memory_space<vmem>>, %arg5: memref<1x8x1024xf32, #tpu.memory_space<vmem>>) attributes {dimension_semantics = [#tpu.dimension_semantics<parallel>], iteration_bounds = array<i64: 2>, scalar_prefetch = 0 : i64, scratch_operands = 0 : i64, tpu.core_type = #tpu.core_type<tc>, window_params = [{transform_indices = @transform_0, window_bounds = array<i64: 1, 36, 1024>}, {pipeline_mode = #tpu.pipeline_mode<synchronous>, transform_indices = @transform_1, window_bounds = array<i64: 8, 36>}, {pipeline_mode = #tpu.pipeline_mode<synchronous>, transform_indices = @transform_2, window_bounds = array<i64: 8, 1>}, {pipeline_mode = #tpu.pipeline_mode<synchronous>, transform_indices = @transform_3, window_bounds = array<i64: 8, 1>}, {transform_indices = @transform_4, window_bounds = array<i64: 1, 8, 1024>}]} {
    %c0 = arith.constant 0 : index
    %c0_0 = arith.constant 0 : index
    %0 = vector.load %arg2[%c0, %c0_0] : memref<8x36xbf16, #tpu.memory_space<vmem>>, vector<8x36xbf16>
    %c0_1 = arith.constant 0 : index
    %c0_2 = arith.constant 0 : index
    %c0_3 = arith.constant 0 : index
    %1 = vector.load %arg1[%c0_1, %c0_2, %c0_3] : memref<1x36x1024xbf16, #tpu.memory_space<vmem>>, vector<1x36x1024xbf16>
    %2 = vector.shape_cast %1 : vector<1x36x1024xbf16> to vector<36x1024xbf16>
    %cst = arith.constant dense<0.000000e+00> : vector<8x1024xf32>
    %3 = tpu.matmul %0, %2, %cst {dimension_numbers = #tpu.dot_dimension_numbers<[1], [0], [0], [1], [0, 0, 1, 1], [], []>} : vector<8x36xbf16>, vector<36x1024xbf16>, vector<8x1024xf32> -> vector<8x1024xf32>
    %cst_4 = arith.constant dense<0.000000e+00> : vector<8xf32>
    %4 = vector.multi_reduction <add>, %3, %cst_4 [1] : vector<8x1024xf32> to vector<8xf32>
    %5 = vector.shape_cast %4 : vector<8xf32> to vector<8x1xf32>
    %cst_5 = arith.constant 9.765625E-4 : f32
    %6 = vector.broadcast %cst_5 : f32 to vector<8x1xf32>
    %7 = arith.mulf %5, %6 : vector<8x1xf32>
    %8 = vector.broadcast %7 : vector<8x1xf32> to vector<8x1024xf32>
    %9 = arith.subf %3, %8 : vector<8x1024xf32>
    %10 = arith.mulf %9, %9 : vector<8x1024xf32>
    %cst_6 = arith.constant dense<0.000000e+00> : vector<8xf32>
    %11 = vector.multi_reduction <add>, %10, %cst_6 [1] : vector<8x1024xf32> to vector<8xf32>
    %12 = vector.shape_cast %11 : vector<8xf32> to vector<8x1xf32>
    %cst_7 = arith.constant 9.765625E-4 : f32
    %13 = vector.broadcast %cst_7 : f32 to vector<8x1xf32>
    %14 = arith.mulf %12, %13 : vector<8x1xf32>
    %cst_8 = arith.constant 9.99999974E-6 : f32
    %15 = vector.broadcast %cst_8 : f32 to vector<8x1xf32>
    %16 = arith.addf %14, %15 : vector<8x1xf32>
    %17 = math.rsqrt %16 : vector<8x1xf32>
    %c0_9 = arith.constant 0 : index
    %c0_10 = arith.constant 0 : index
    %18 = vector.load %arg3[%c0_9, %c0_10] : memref<8x1xf32, #tpu.memory_space<vmem>>, vector<8x1xf32>
    %19 = arith.mulf %17, %18 : vector<8x1xf32>
    %20 = vector.broadcast %19 : vector<8x1xf32> to vector<8x1024xf32>
    %21 = arith.mulf %9, %20 : vector<8x1024xf32>
    %c0_11 = arith.constant 0 : index
    %c0_12 = arith.constant 0 : index
    %22 = vector.load %arg4[%c0_11, %c0_12] : memref<8x1xf32, #tpu.memory_space<vmem>>, vector<8x1xf32>
    %23 = vector.broadcast %22 : vector<8x1xf32> to vector<8x1024xf32>
    %24 = arith.addf %21, %23 : vector<8x1024xf32>
    %c0_13 = arith.constant 0 : index
    %c0_14 = arith.constant 0 : index
    %c0_15 = arith.constant 0 : index
    %25 = vector.load %arg5[%c0_13, %c0_14, %c0_15] : memref<1x8x1024xf32, #tpu.memory_space<vmem>>, vector<1x8x1024xf32>
    %26 = vector.shape_cast %25 : vector<1x8x1024xf32> to vector<8x1024xf32>
    %27 = vector.shape_cast %24 : vector<8x1024xf32> to vector<1x8x1024xf32>
    tpu.vector_store %arg5[%c0_13, %c0_14, %c0_15], %27 {strides = array<i32>} : memref<1x8x1024xf32, #tpu.memory_space<vmem>>, vector<1x8x1024xf32>,
    return
  }
  func.func @transform_0(%arg0: i32) -> (i32, i32, i32) {
    %c0_i32 = arith.constant 0 : i32
    %c0_i32_0 = arith.constant 0 : i32
    %c0_i32_1 = arith.constant 0 : i32
    return %arg0, %c0_i32, %c0_i32_0 : i32, i32, i32
  }
  func.func @transform_1(%arg0: i32) -> (i32, i32) {
    %c0_i32 = arith.constant 0 : i32
    %c0_i32_0 = arith.constant 0 : i32
    %c0_i32_1 = arith.constant 0 : i32
    return %c0_i32, %c0_i32_0 : i32, i32
  }
  func.func @transform_2(%arg0: i32) -> (i32, i32) {
    %c0_i32 = arith.constant 0 : i32
    %c0_i32_0 = arith.constant 0 : i32
    %c0_i32_1 = arith.constant 0 : i32
    return %c0_i32, %c0_i32_0 : i32, i32
  }
  func.func @transform_3(%arg0: i32) -> (i32, i32) {
    %c0_i32 = arith.constant 0 : i32
    %c0_i32_0 = arith.constant 0 : i32
    %c0_i32_1 = arith.constant 0 : i32
    return %c0_i32, %c0_i32_0 : i32, i32
  }
  func.func @transform_4(%arg0: i32) -> (i32, i32, i32) {
    %c0_i32 = arith.constant 0 : i32
    %c0_i32_0 = arith.constant 0 : i32
    %c0_i32_1 = arith.constant 0 : i32
    return %arg0, %c0_i32, %c0_i32_0 : i32, i32, i32
  }
}

</mosaic_0001>

<llo_original>
// kernel: deconv_layer_pallas.1
$region0: #{deconv_layer_pallas.1}
  #allocation0 [shape = 'u32[]', space=smem, size = 0x4, offset = 0x4, fixed_abs, tag = 'smem constant byte address 0x4 - core index']
  #allocation1 [shape = 'u32[144,128]{1,0:T(1,128)}', space=vmem, size = 0x12000, scoped, tag = 'internal scratch']
  %s0 = inlined_call_operand.vmem [shape: bf16[2,36,1024], index: 0, kind: input, shape index: {}]
  %s1 = inlined_call_operand.vmem [shape: bf16[8,36], index: 1, kind: input, shape index: {}]
  %s2 = inlined_call_operand.vmem [shape: f32[8,1], index: 2, kind: input, shape index: {}]
  %s3 = inlined_call_operand.vmem [shape: f32[8,1], index: 3, kind: input, shape index: {}]
  %s4 = inlined_call_operand.vmem [shape: f32[2,8,1024], index: 4, kind: output, shape index: {}]
  %s5 = sld [smem:[#allocation0]]
  $region49: #{deconv_layer_pallas.1} parent=0
    _
  %s7 = ssub.s32 1, %s5
  %s8 = scalar_select 0, %s7, %s5
  loop: start=0, step=1, limit=4
  $region2: #{deconv_layer_pallas.1} parent=0 // loop_pre_header
    _
  $region3: #{deconv_layer_pallas.1} parent=0 // loop_header
    %s10 = sphi 0, %s14
    %p11 = scmp.ge.s32.totalorder %s10, 4
    %s20 = sphi 0, %s22
    %s23 = sphi 0, %s20
    %s24 = sphi 0, %s23
    %s40 = sphi 0, %s24
    %s44 = sphi 0, %s44
    %s46 = sphi 0, %s44
    %s47 = sphi 0, %s46
    %s61 = sphi 0, %s47
    %s65 = sphi 0, %s65
    %s67 = sphi 0, %s65
    %s68 = sphi 0, %s67
    %s82 = sphi 0, %s68
    %s86 = sphi 0, %s86
    %s88 = sphi 0, %s86
    %s89 = sphi 0, %s88
    %s103 = sphi 0, %s89
    %s109 = sphi 0, %s111
    %s112 = sphi 0, %s109
    %s113 = sphi 0, %s112
    %s129 = sphi 0, %s113
  $region4: #{deconv_layer_pallas.1} parent=0 // loop_header_branch
    %13 = sbr.rel (%p11) target = $region8
  $region5: #{deconv_layer_pallas.1} parent=0 // loop_body
    %s15 = ssub.s32 %s10, 1
    %s16 = ssub.s32 %s10, 2
    %s17 = sadd.s32 %s10, 1
    %s18 = ssub.s32 %s10, %s17
    %p19 = scmp.eq.s32.totalorder %s18, 0
    %s21 = sadd.s32 %s20, 1
    %s22 = scalar_select %p19, %s20, %s21
    %p25 = pneg %p19
    %p26 = scmp.eq.s32.totalorder %s10, 1
    %p27 = por %p25, %p26
    %p28 = scmp.ne.s32.totalorder %s20, %s23
    %p29 = scmp.eq.s32.totalorder %s10, 0
    %p30 = por %p28, %p29
    %p31 = scmp.ne.s32.totalorder %s20, %s23
    %p32 = scmp.eq.s32.totalorder %s15, 1
    %p33 = por %p31, %p32
    %p34 = scmp.ne.s32.totalorder %s23, %s24
    %p35 = scmp.eq.s32.totalorder %s15, 0
    %p36 = por %p34, %p35
    %p37 = scmp.ne.s32.totalorder %s23, %s24
    %p38 = scmp.eq.s32.totalorder %s16, 1
    %p39 = por %p37, %p38
    %p41 = scmp.ne.s32.totalorder %s24, %s40
    %p42 = scmp.eq.s32.totalorder %s16, 0
    %p43 = por %p41, %p42
    %s45 = sadd.s32 %s44, 1
    %p48 = scmp.eq.s32.totalorder %s10, 1
    %p49 = scmp.ne.s32.totalorder %s44, %s46
    %p50 = scmp.eq.s32.totalorder %s10, 0
    %p51 = por %p49, %p50
    %p52 = scmp.ne.s32.totalorder %s44, %s46
    %p53 = scmp.eq.s32.totalorder %s15, 1
    %p54 = por %p52, %p53
    %p55 = scmp.ne.s32.totalorder %s46, %s47
    %p56 = scmp.eq.s32.totalorder %s15, 0
    %p57 = por %p55, %p56
    %p58 = scmp.ne.s32.totalorder %s46, %s47
    %p59 = scmp.eq.s32.totalorder %s16, 1
    %p60 = por %p58, %p59
    %p62 = scmp.ne.s32.totalorder %s47, %s61
    %p63 = scmp.eq.s32.totalorder %s16, 0
    %p64 = por %p62, %p63
    %s66 = sadd.s32 %s65, 1
    %p69 = scmp.eq.s32.totalorder %s10, 1
    %p70 = scmp.ne.s32.totalorder %s65, %s67
    %p71 = scmp.eq.s32.totalorder %s10, 0
    %p72 = por %p70, %p71
    %p73 = scmp.ne.s32.totalorder %s65, %s67
    %p74 = scmp.eq.s32.totalorder %s15, 1
    %p75 = por %p73, %p74
    %p76 = scmp.ne.s32.totalorder %s67, %s68
    %p77 = scmp.eq.s32.totalorder %s15, 0
    %p78 = por %p76, %p77
    %p79 = scmp.ne.s32.totalorder %s67, %s68
    %p80 = scmp.eq.s32.totalorder %s16, 1
    %p81 = por %p79, %p80
    %p83 = scmp.ne.s32.totalorder %s68, %s82
    %p84 = scmp.eq.s32.totalorder %s16, 0
    %p85 = por %p83, %p84
    %s87 = sadd.s32 %s86, 1
    %p90 = scmp.eq.s32.totalorder %s10, 1
    %p91 = scmp.ne.s32.totalorder %s86, %s88
    %p92 = scmp.eq.s32.totalorder %s10, 0
    %p93 = por %p91, %p92
    %p94 = scmp.ne.s32.totalorder %s86, %s88
    %p95 = scmp.eq.s32.totalorder %s15, 1
    %p96 = por %p94, %p95
    %p97 = scmp.ne.s32.totalorder %s88, %s89
    %p98 = scmp.eq.s32.totalorder %s15, 0
    %p99 = por %p97, %p98
    %p100 = scmp.ne.s32.totalorder %s88, %s89
    %p101 = scmp.eq.s32.totalorder %s16, 1
    %p102 = por %p100, %p101
    %p104 = scmp.ne.s32.totalorder %s89, %s103
    %p105 = scmp.eq.s32.totalorder %s16, 0
    %p106 = por %p104, %p105
    %s107 = ssub.s32 %s10, %s17
    %p108 = scmp.eq.s32.totalorder %s107, 0
    %s110 = sadd.s32 %s109, 1
    %s111 = scalar_select %p108, %s109, %s110
    %p114 = pneg %p108
    %p115 = scmp.eq.s32.totalorder %s10, 1
    %p116 = por %p114, %p115
    %p117 = scmp.ne.s32.totalorder %s109, %s112
    %p118 = scmp.eq.s32.totalorder %s10, 0
    %p119 = por %p117, %p118
    %p120 = scmp.ne.s32.totalorder %s109, %s112
    %p121 = scmp.eq.s32.totalorder %s15, 1
    %p122 = por %p120, %p121
    %p123 = scmp.ne.s32.totalorder %s112, %s113
    %p124 = scmp.eq.s32.totalorder %s15, 0
    %p125 = por %p123, %p124
    %p126 = scmp.ne.s32.totalorder %s112, %s113
    %p127 = scmp.eq.s32.totalorder %s16, 1
    %p128 = por %p126, %p127
    %p130 = scmp.ne.s32.totalorder %s113, %s129
    %p131 = scmp.eq.s32.totalorder %s16, 0
    %p132 = por %p130, %p131
    %p133 = scmp.le.s32.totalorder 1, %s10
    %p134 = scmp.lt.s32.totalorder %s10, 3
    %p135 = pnand %p133, %p134
    %p136 = pneg %p135
    // Predicated region
    $region9: #{deconv_layer_pallas.1} parent=5 // pred_check
      _
    $region10: #{deconv_layer_pallas.1} parent=5 // pred_check_branch
      %138 = sbr.rel (%p135) target = $region12
    $region11: #{deconv_layer_pallas.1} parent=5 // pred_region
      %s139 = ssub.s32 %s10, 1
      // Predicated region
      $region13: #{deconv_layer_pallas.1} parent=11 // pred_check
        %p140 = pneg %p57
      $region14: #{deconv_layer_pallas.1} parent=11 // pred_check_branch
        %142 = sbr.rel (%p140) target = $region16
      $region15: #{deconv_layer_pallas.1} parent=11 // pred_region
        _
      $region16: #{deconv_layer_pallas.1} parent=11 // pred_fallthru
        _
      // Predicated region
      $region17: #{deconv_layer_pallas.1} parent=11 // pred_check
        %p143 = pneg %p78
      $region18: #{deconv_layer_pallas.1} parent=11 // pred_check_branch
        %145 = sbr.rel (%p143) target = $region20
      $region19: #{deconv_layer_pallas.1} parent=11 // pred_region
        _
      $region20: #{deconv_layer_pallas.1} parent=11 // pred_fallthru
        _
      // Predicated region
      $region21: #{deconv_layer_pallas.1} parent=11 // pred_check
        %p146 = pneg %p99
      $region22: #{deconv_layer_pallas.1} parent=11 // pred_check_branch
        %148 = sbr.rel (%p146) target = $region24
      $region23: #{deconv_layer_pallas.1} parent=11 // pred_region
        _
      $region24: #{deconv_layer_pallas.1} parent=11 // pred_fallthru
        _
    $region12: #{deconv_layer_pallas.1} parent=5 // pred_fallthru
      _
    %p149 = scmp.lt.s32.totalorder %s10, 2
    // Predicated region
    $region25: #{deconv_layer_pallas.1} parent=5 // pred_check
      %p150 = pneg %p149
    $region26: #{deconv_layer_pallas.1} parent=5 // pred_check_branch
      %152 = sbr.rel (%p150) target = $region28
    $region27: #{deconv_layer_pallas.1} parent=5 // pred_region
      // Predicated region
      $region29: #{deconv_layer_pallas.1} parent=27 // pred_check
        %p153 = pneg %p30
      $region30: #{deconv_layer_pallas.1} parent=27 // pred_check_branch
        %155 = sbr.rel (%p153) target = $region32
      $region31: #{deconv_layer_pallas.1} parent=27 // pred_region
        %p156 = scmp.lt.s32.totalorder %s10, 1
        %s157 = scalar_select %p156, %s10, 1
        %s158 = smul.addr %s157, 40
        %s159 = smul.addr %s158, 4
        %s160 = scalar_lea.vmem %s0, %s159
      $region32: #{deconv_layer_pallas.1} parent=27 // pred_fallthru
        _
    $region28: #{deconv_layer_pallas.1} parent=5 // pred_fallthru
      _
    %p161 = scmp.le.s32.totalorder 1, %s10
    %p162 = scmp.lt.s32.totalorder %s10, 3
    %p163 = pnand %p161, %p162
    %p164 = pneg %p163
    // Predicated region
    $region33: #{deconv_layer_pallas.1} parent=5 // pred_check
      _
    $region34: #{deconv_layer_pallas.1} parent=5 // pred_check_branch
      %166 = sbr.rel (%p163) target = $region36
    $region35: #{deconv_layer_pallas.1} parent=5 // pred_region
      %s167 = ssub.s32 %s10, 1
      %p168 = scmp.lt.s32.totalorder %s15, 1
      %s169 = scalar_select %p168, %s15, 1
      %s170 = smul.addr %s169, 40
      %s171 = smul.addr %s170, 4
      %s172 = scalar_lea.vmem %s0, %s171
      %p173 = pneg %p36
      %p174 = pneg %p33
      %p175 = pneg %p57
      %p176 = pneg %p54
      %p177 = pneg %p78
      %p178 = pneg %p75
      %p179 = pneg %p99
      %p180 = pneg %p96
      %p181 = pneg %p125
      %p182 = pneg %p122
      %p183 = scmp.lt.s32.totalorder %s15, 1
      %s184 = scalar_select %p183, %s15, 1
      %s185 = smul.addr %s184, 8
      %s186 = smul.addr %s185, 8
      %s187 = scalar_lea.vmem %s4, %s186
      %p188 = scmp.lt.s32.totalorder %s15, 1
      %s189 = scalar_select %p188, %s15, 1
      %s190 = smul.addr %s189, 40
      %s191 = smul.addr %s190, 4
      %s192 = scalar_lea.vmem %s0, %s191
      %p193 = scmp.lt.s32.totalorder %s15, 1
      %s194 = scalar_select %p193, %s15, 1
      %s195 = smul.addr %s194, 8
      %s196 = smul.addr %s195, 8
      %s197 = scalar_lea.vmem %s4, %s196
      %v199 = vld [vmem:[%s1] sm:$0xf]
      %v200 = vld [vmem:[%s192] sm:$0xff]
      %v201 = vld [vmem:[%s192 + $0x8] sm:$0xff]
      %v202 = vld [vmem:[%s192 + $0x10] sm:$0xff]
      %v203 = vld [vmem:[%s192 + $0x18] sm:$0xff]
      %v204 = vld [vmem:[%s192 + $0x20] sm:$0xff]
      %v205 = vld [vmem:[%s192 + $0x28] sm:$0xff]
      %v206 = vld [vmem:[%s192 + $0x30] sm:$0xff]
      %v207 = vld [vmem:[%s192 + $0x38] sm:$0xff]
      %v208 = vld [vmem:[%s192 + $0x40] sm:$0xff]
      %v209 = vld [vmem:[%s192 + $0x48] sm:$0xff]
      %v210 = vld [vmem:[%s192 + $0x50] sm:$0xff]
      %v211 = vld [vmem:[%s192 + $0x58] sm:$0xff]
      %v212 = vld [vmem:[%s192 + $0x60] sm:$0xff]
      %v213 = vld [vmem:[%s192 + $0x68] sm:$0xff]
      %v214 = vld [vmem:[%s192 + $0x70] sm:$0xff]
      %v215 = vld [vmem:[%s192 + $0x78] sm:$0xff]
      %v216 = vld [vmem:[%s192 + $0x80] sm:$0x33]
      %v217 = vld [vmem:[%s192 + $0x88] sm:$0x33]
      %v218 = vld [vmem:[%s192 + $0x90] sm:$0x33]
      %v219 = vld [vmem:[%s192 + $0x98] sm:$0x33]
      %v240 = vunpack.c.l.b16 %v200
      %v241 = vunpack.c.h.b16 %v200
      %v242 = vunpack.c.l.b16 %v201
      %v243 = vunpack.c.h.b16 %v201
      %v244 = vunpack.c.l.b16 %v202
      %v245 = vunpack.c.h.b16 %v202
      %v246 = vunpack.c.l.b16 %v203
      %v247 = vunpack.c.h.b16 %v203
      %v248 = vunpack.c.l.b16 %v204
      %v249 = vunpack.c.h.b16 %v204
      %v250 = vunpack.c.l.b16 %v205
      %v251 = vunpack.c.h.b16 %v205
      %v252 = vunpack.c.l.b16 %v206
      %v253 = vunpack.c.h.b16 %v206
      %v254 = vunpack.c.l.b16 %v207
      %v255 = vunpack.c.h.b16 %v207
      %v256 = vunpack.c.l.b16 %v208
      %v257 = vunpack.c.h.b16 %v208
      %v258 = vunpack.c.l.b16 %v209
      %v259 = vunpack.c.h.b16 %v209
      %v260 = vunpack.c.l.b16 %v210
      %v261 = vunpack.c.h.b16 %v210
      %v262 = vunpack.c.l.b16 %v211
      %v263 = vunpack.c.h.b16 %v211
      %v264 = vunpack.c.l.b16 %v212
      %v265 = vunpack.c.h.b16 %v212
      %v266 = vunpack.c.l.b16 %v213
      %v267 = vunpack.c.h.b16 %v213
      %v268 = vunpack.c.l.b16 %v214
      %v269 = vunpack.c.h.b16 %v214
      %v270 = vunpack.c.l.b16 %v215
      %v271 = vunpack.c.h.b16 %v215
      %v272 = vunpack.c.l.b16 %v216
      %v273 = vunpack.c.h.b16 %v216
      %v274 = vunpack.c.l.b16 %v217
      %v275 = vunpack.c.h.b16 %v217
      %v276 = vunpack.c.l.b16 %v218
      %v277 = vunpack.c.h.b16 %v218
      %v278 = vunpack.c.l.b16 %v219
      %v279 = vunpack.c.h.b16 %v219
      %v280 = vpack.c.b16 %v248, %v240
      %v281 = vpack.c.b16 %v249, %v241
      %v282 = vpack.c.b16 %v250, %v242
      %v283 = vpack.c.b16 %v251, %v243
      %v284 = vpack.c.b16 %v252, %v244
      %v285 = vpack.c.b16 %v253, %v245
      %v286 = vpack.c.b16 %v254, %v246
      %v287 = vpack.c.b16 %v255, %v247
      %v288 = vpack.c.b16 %v264, %v256
      %v289 = vpack.c.b16 %v265, %v257
      %v290 = vpack.c.b16 %v266, %v258
      %v291 = vpack.c.b16 %v267, %v259
      %v292 = vpack.c.b16 %v268, %v260
      %v293 = vpack.c.b16 %v269, %v261
      %v294 = vpack.c.b16 %v270, %v262
      %v295 = vpack.c.b16 %v271, %v263
      %v296 = vpack.c.b16 %v272, %v272
      %v297 = vpack.c.b16 %v273, %v273
      %v298 = vpack.c.b16 %v274, %v274
      %v299 = vpack.c.b16 %v275, %v275
      %v300 = vpack.c.b16 %v276, %v276
      %v301 = vpack.c.b16 %v277, %v277
      %v302 = vpack.c.b16 %v278, %v278
      %v303 = vpack.c.b16 %v279, %v279
      %vm320 = vcmask 293888
      %v322 = vsel %vm320, %v199, 0
      %vm324 = vcmask 1041408
      %v326 = vsel %vm324, %v296, 0
      %v329 = vsel %vm324, %v297, 0
      %v332 = vsel %vm324, %v298, 0
      %v335 = vsel %vm324, %v299, 0
      %v338 = vsel %vm324, %v300, 0
      %v341 = vsel %vm324, %v301, 0
      %v344 = vsel %vm324, %v302, 0
      %v347 = vsel %vm324, %v303, 0
      %349 = vmatprep.subr.bf16.mxu0 0
      %350 = vmatpush1.bf16.msra.mxu0 0
      %351 = vmatprep.subr.bf16.mxu0 0
      %352 = vmatpush1.bf16.msra.mxu0 0
      %353 = vmatprep.subr.bf16.mxu0 0
      %354 = vmatpush1.bf16.msra.mxu0 0
      %355 = vmatprep.subr.bf16.mxu0 0
      %356 = vmatpush1.bf16.msra.mxu0 0
      %357 = vmatprep.subr.bf16.mxu0 0
      %358 = vmatpush1.bf16.msra.mxu0 0
      %359 = vmatprep.subr.bf16.mxu0 %v329
      %360 = vmatpush1.bf16.msra.mxu0 %v326
      %361 = vmatprep.subr.bf16.mxu0 %v289
      %362 = vmatpush1.bf16.msra.mxu0 %v288
      %363 = vmatprep.subr.bf16.mxu0 %v281
      %364 = vmatpush1.bf16.msra.mxu0 %v280
      %365 = vmatprep.subr.bf16.mxu0 0
      %366 = vmatpush2.bf16.msra.mxu0 0
      %367 = vmatprep.subr.bf16.mxu0 0
      %368 = vmatpush2.bf16.msra.mxu0 0
      %369 = vmatprep.subr.bf16.mxu0 0
      %370 = vmatpush2.bf16.msra.mxu0 0
      %371 = vmatprep.subr.bf16.mxu0 0
      %372 = vmatpush2.bf16.msra.mxu0 0
      %373 = vmatprep.subr.bf16.mxu0 0
      %374 = vmatpush2.bf16.msra.mxu0 0
      %375 = vmatprep.subr.bf16.mxu0 0
      %376 = vmatpush2.bf16.msra.mxu0 0
      %377 = vmatprep.subr.bf16.mxu0 0
      %378 = vmatpush2.bf16.msra.mxu0 0
      %379 = vmatprep.subr.bf16.mxu0 0
      %380 = vmatpush2.bf16.msra.mxu0 0
      %381 = vmatprep.mubr.bf16.mxu0 0
      %382 = vmatmul.mubr.bf16.gmra.mxu0 %v322
      %v383 = vpop.f32.mrf.mxu0
      %v384 = vadd.f32 0.0, %v383
      %v385 = vpop.f32.mrf.mxu0
      %v386 = vadd.f32 0.0, %v385
      %v387 = vpop.f32.mrf.mxu0
      %v388 = vpop.f32.mrf.mxu0
      %389 = vdwg.mxu0
      %390 = vmatprep.subr.bf16.mxu0 0
      %391 = vmatpush1.bf16.msra.mxu0 0
      %392 = vmatprep.subr.bf16.mxu0 0
      %393 = vmatpush1.bf16.msra.mxu0 0
      %394 = vmatprep.subr.bf16.mxu0 0
      %395 = vmatpush1.bf16.msra.mxu0 0
      %396 = vmatprep.subr.bf16.mxu0 0
      %397 = vmatpush1.bf16.msra.mxu0 0
      %398 = vmatprep.subr.bf16.mxu0 0
      %399 = vmatpush1.bf16.msra.mxu0 0
      %400 = vmatprep.subr.bf16.mxu0 %v335
      %401 = vmatpush1.bf16.msra.mxu0 %v332
      %402 = vmatprep.subr.bf16.mxu0 %v291
      %403 = vmatpush1.bf16.msra.mxu0 %v290
      %404 = vmatprep.subr.bf16.mxu0 %v283
      %405 = vmatpush1.bf16.msra.mxu0 %v282
      %406 = vmatprep.subr.bf16.mxu0 0
      %407 = vmatpush2.bf16.msra.mxu0 0
      %408 = vmatprep.subr.bf16.mxu0 0
      %409 = vmatpush2.bf16.msra.mxu0 0
      %410 = vmatprep.subr.bf16.mxu0 0
      %411 = vmatpush2.bf16.msra.mxu0 0
      %412 = vmatprep.subr.bf16.mxu0 0
      %413 = vmatpush2.bf16.msra.mxu0 0
      %414 = vmatprep.subr.bf16.mxu0 0
      %415 = vmatpush2.bf16.msra.mxu0 0
      %416 = vmatprep.subr.bf16.mxu0 0
      %417 = vmatpush2.bf16.msra.mxu0 0
      %418 = vmatprep.subr.bf16.mxu0 0
      %419 = vmatpush2.bf16.msra.mxu0 0
      %420 = vmatprep.subr.bf16.mxu0 0
      %421 = vmatpush2.bf16.msra.mxu0 0
      %422 = vmatprep.mubr.bf16.mxu0 0
      %423 = vmatmul.mubr.bf16.gmra.mxu0 %v322
      %v424 = vpop.f32.mrf.mxu0
      %v425 = vadd.f32 0.0, %v424
      %v426 = vpop.f32.mrf.mxu0
      %v427 = vadd.f32 0.0, %v426
      %v428 = vpop.f32.mrf.mxu0
      %v429 = vpop.f32.mrf.mxu0
      %430 = vdwg.mxu0
      %431 = vmatprep.subr.bf16.mxu0 0
      %432 = vmatpush1.bf16.msra.mxu0 0
      %433 = vmatprep.subr.bf16.mxu0 0
      %434 = vmatpush1.bf16.msra.mxu0 0
      %435 = vmatprep.subr.bf16.mxu0 0
      %436 = vmatpush1.bf16.msra.mxu0 0
      %437 = vmatprep.subr.bf16.mxu0 0
      %438 = vmatpush1.bf16.msra.mxu0 0
      %439 = vmatprep.subr.bf16.mxu0 0
      %440 = vmatpush1.bf16.msra.mxu0 0
      %441 = vmatprep.subr.bf16.mxu0 %v341
      %442 = vmatpush1.bf16.msra.mxu0 %v338
      %443 = vmatprep.subr.bf16.mxu0 %v293
      %444 = vmatpush1.bf16.msra.mxu0 %v292
      %445 = vmatprep.subr.bf16.mxu0 %v285
      %446 = vmatpush1.bf16.msra.mxu0 %v284
      %447 = vmatprep.subr.bf16.mxu0 0
      %448 = vmatpush2.bf16.msra.mxu0 0
      %449 = vmatprep.subr.bf16.mxu0 0
      %450 = vmatpush2.bf16.msra.mxu0 0
      %451 = vmatprep.subr.bf16.mxu0 0
      %452 = vmatpush2.bf16.msra.mxu0 0
      %453 = vmatprep.subr.bf16.mxu0 0
      %454 = vmatpush2.bf16.msra.mxu0 0
      %455 = vmatprep.subr.bf16.mxu0 0
      %456 = vmatpush2.bf16.msra.mxu0 0
      %457 = vmatprep.subr.bf16.mxu0 0
      %458 = vmatpush2.bf16.msra.mxu0 0
      %459 = vmatprep.subr.bf16.mxu0 0
      %460 = vmatpush2.bf16.msra.mxu0 0
      %461 = vmatprep.subr.bf16.mxu0 0
      %462 = vmatpush2.bf16.msra.mxu0 0
      %463 = vmatprep.mubr.bf16.mxu0 0
      %464 = vmatmul.mubr.bf16.gmra.mxu0 %v322
      %v465 = vpop.f32.mrf.mxu0
      %v466 = vadd.f32 0.0, %v465
      %v467 = vpop.f32.mrf.mxu0
      %v468 = vadd.f32 0.0, %v467
      %v469 = vpop.f32.mrf.mxu0
      %v470 = vpop.f32.mrf.mxu0
      %471 = vdwg.mxu0
      %472 = vmatprep.subr.bf16.mxu0 0
      %473 = vmatpush1.bf16.msra.mxu0 0
      %474 = vmatprep.subr.bf16.mxu0 0
      %475 = vmatpush1.bf16.msra.mxu0 0
      %476 = vmatprep.subr.bf16.mxu0 0
      %477 = vmatpush1.bf16.msra.mxu0 0
      %478 = vmatprep.subr.bf16.mxu0 0
      %479 = vmatpush1.bf16.msra.mxu0 0
      %480 = vmatprep.subr.bf16.mxu0 0
      %481 = vmatpush1.bf16.msra.mxu0 0
      %482 = vmatprep.subr.bf16.mxu0 %v347
      %483 = vmatpush1.bf16.msra.mxu0 %v344
      %484 = vmatprep.subr.bf16.mxu0 %v295
      %485 = vmatpush1.bf16.msra.mxu0 %v294
      %486 = vmatprep.subr.bf16.mxu0 %v287
      %487 = vmatpush1.bf16.msra.mxu0 %v286
      %488 = vmatprep.subr.bf16.mxu0 0
      %489 = vmatpush2.bf16.msra.mxu0 0
      %490 = vmatprep.subr.bf16.mxu0 0
      %491 = vmatpush2.bf16.msra.mxu0 0
      %492 = vmatprep.subr.bf16.mxu0 0
      %493 = vmatpush2.bf16.msra.mxu0 0
      %494 = vmatprep.subr.bf16.mxu0 0
      %495 = vmatpush2.bf16.msra.mxu0 0
      %496 = vmatprep.subr.bf16.mxu0 0
      %497 = vmatpush2.bf16.msra.mxu0 0
      %498 = vmatprep.subr.bf16.mxu0 0
      %499 = vmatpush2.bf16.msra.mxu0 0
      %500 = vmatprep.subr.bf16.mxu0 0
      %501 = vmatpush2.bf16.msra.mxu0 0
      %502 = vmatprep.subr.bf16.mxu0 0
      %503 = vmatpush2.bf16.msra.mxu0 0
      %504 = vmatprep.mubr.bf16.mxu0 0
      %505 = vmatmul.mubr.bf16.gmra.mxu0 %v322
      %v506 = vpop.f32.mrf.mxu0
      %v507 = vadd.f32 0.0, %v506
      %v508 = vpop.f32.mrf.mxu0
      %v509 = vadd.f32 0.0, %v508
      %v510 = vpop.f32.mrf.mxu0
      %v511 = vpop.f32.mrf.mxu0
      %512 = vdwg.mxu0
      %v513 = vadd.f32 %v384, %v386
      %v514 = vadd.f32 %v513, %v425
      %v515 = vadd.f32 %v514, %v427
      %v516 = vadd.f32 %v515, %v466
      %v517 = vadd.f32 %v516, %v468
      %v518 = vadd.f32 %v517, %v507
      %v519 = vadd.f32 %v518, %v509
      %520 = vadd.xlane.f32.xlu0 %v519
      %v521 = vpop.xlane.xlu0 %520
      %v522 = vmul.f32 %v521, 0.0009765625
      %v523 = vsub.f32 %v384, %v522
      %v524 = vsub.f32 %v386, %v522
      %v525 = vsub.f32 %v425, %v522
      %v526 = vsub.f32 %v427, %v522
      %v527 = vsub.f32 %v466, %v522
      %v528 = vsub.f32 %v468, %v522
      %v529 = vsub.f32 %v507, %v522
      %v530 = vsub.f32 %v509, %v522
      %v531 = vmul.f32 %v523, %v523
      %v532 = vmul.f32 %v524, %v524
      %v533 = vmul.f32 %v525, %v525
      %v534 = vmul.f32 %v526, %v526
      %v535 = vmul.f32 %v527, %v527
      %v536 = vmul.f32 %v528, %v528
      %v537 = vmul.f32 %v529, %v529
      %v538 = vmul.f32 %v530, %v530
      %v539 = vadd.f32 %v531, %v532
      %v540 = vadd.f32 %v539, %v533
      %v541 = vadd.f32 %v540, %v534
      %v542 = vadd.f32 %v541, %v535
      %v543 = vadd.f32 %v542, %v536
      %v544 = vadd.f32 %v543, %v537
      %v545 = vadd.f32 %v544, %v538
      %546 = vadd.xlane.f32.xlu0 %v545
      %v547 = vpop.xlane.xlu0 %546
      %v548 = vmul.f32 %v547, 0.0009765625
      %v549 = vadd.f32 %v548, 1e-05
      %v550 = vrsqrt.pop %v549
      %v551 = vld [vmem:[%s2] sm:$0xff]
      %v552 = vmul.f32 %v550, %v551
      %554 = vset.pattern.permute.xlu0 0
      %555 = vperm.xlu0 %554, %v552
      %v556 = vpop.permute.xlu0 %555
      %v558 = vmul.f32 %v523, %v556
      %v559 = vmul.f32 %v524, %v556
      %v560 = vmul.f32 %v525, %v556
      %v561 = vmul.f32 %v526, %v556
      %v562 = vmul.f32 %v527, %v556
      %v563 = vmul.f32 %v528, %v556
      %v564 = vmul.f32 %v529, %v556
      %v565 = vmul.f32 %v530, %v556
      %v566 = vld [vmem:[%s3] sm:$0xff]
      %568 = vset.pattern.permute.xlu0 0
      %569 = vperm.xlu0 %568, %v566
      %v570 = vpop.permute.xlu0 %569
      %v572 = vadd.f32 %v558, %v570
      %v573 = vadd.f32 %v559, %v570
      %v574 = vadd.f32 %v560, %v570
      %v575 = vadd.f32 %v561, %v570
      %v576 = vadd.f32 %v562, %v570
      %v577 = vadd.f32 %v563, %v570
      %v578 = vadd.f32 %v564, %v570
      %v579 = vadd.f32 %v565, %v570
      %580 = vst [vmem:[%s197] sm:$0xff] %v572
      %581 = vst [vmem:[%s197 + $0x8] sm:$0xff] %v573
      %582 = vst [vmem:[%s197 + $0x10] sm:$0xff] %v574
      %583 = vst [vmem:[%s197 + $0x18] sm:$0xff] %v575
      %584 = vst [vmem:[%s197 + $0x20] sm:$0xff] %v576
      %585 = vst [vmem:[%s197 + $0x28] sm:$0xff] %v577
      %586 = vst [vmem:[%s197 + $0x30] sm:$0xff] %v578
      %587 = vst [vmem:[%s197 + $0x38] sm:$0xff] %v579
      %p588 = scmp.lt.s32.totalorder %s15, 1
      %s589 = scalar_select %p588, %s15, 1
      %s590 = smul.addr %s589, 8
      %s591 = smul.addr %s590, 8
      %s592 = scalar_lea.vmem %s4, %s591
      // Predicated region
      $region37: #{deconv_layer_pallas.1} parent=35 // pred_check
        %p593 = pneg %p122
      $region38: #{deconv_layer_pallas.1} parent=35 // pred_check_branch
        %595 = sbr.rel (%p593) target = $region40
      $region39: #{deconv_layer_pallas.1} parent=35 // pred_region
        _
      $region40: #{deconv_layer_pallas.1} parent=35 // pred_fallthru
        _
    $region36: #{deconv_layer_pallas.1} parent=5 // pred_fallthru
      _
    %p596 = scmp.le.s32.totalorder 2, %s10
    // Predicated region
    $region41: #{deconv_layer_pallas.1} parent=5 // pred_check
      %p597 = pneg %p596
    $region42: #{deconv_layer_pallas.1} parent=5 // pred_check_branch
      %599 = sbr.rel (%p597) target = $region44
    $region43: #{deconv_layer_pallas.1} parent=5 // pred_region
      %s600 = ssub.s32 %s10, 2
      // Predicated region
      $region45: #{deconv_layer_pallas.1} parent=43 // pred_check
        %p601 = pneg %p128
      $region46: #{deconv_layer_pallas.1} parent=43 // pred_check_branch
        %603 = sbr.rel (%p601) target = $region48
      $region47: #{deconv_layer_pallas.1} parent=43 // pred_region
        %p604 = scmp.lt.s32.totalorder %s16, 1
        %s605 = scalar_select %p604, %s16, 1
        %s606 = smul.addr %s605, 8
        %s607 = smul.addr %s606, 8
        %s608 = scalar_lea.vmem %s4, %s607
      $region48: #{deconv_layer_pallas.1} parent=43 // pred_fallthru
        _
    $region44: #{deconv_layer_pallas.1} parent=5 // pred_fallthru
      _
  $region6: #{deconv_layer_pallas.1} parent=0 // loop_footer
    %s14 = sadd.s32 1, %s10
  $region7: #{deconv_layer_pallas.1} parent=0 // loop_footer_branch
    %9 = sbr.rel target = $region3
  $region8: #{deconv_layer_pallas.1} parent=0 // loop_exit
    _

</llo_original>
